<compile_context>
chip_gen: v7x
topology: tpu7x:2x2x1
jax: 0.10.0
libtpu: 0.0.40
codegen_flags: <defaults>
</compile_context>

<pallas_src>
import jax
import jax.numpy as jnp
from jax.experimental import pallas as pl
from jax.experimental.pallas import tpu as pltpu

X_DIM = 1024      # roberta CLS width
Y_DIM = 768       # speechBert CLS width
FUSE_DIM = 128
OUT_DIM = 4
TILE_B = 1024     # max batch tile (bf16 activations -> ~3.5 MiB/step dbl-buffered)


def lhs_kernel(x_ref, y_ref, wx_ref, wy_ref, b_ref, wo_ref, out_ref):
    """Fused head: relu(x@Wx + y@Wy + b) @ Wo for one batch tile.

    x_ref : (tb, 1024) bf16    y_ref : (tb, 768) bf16
    wx_ref: (1024, 128) bf16   wy_ref: (768, 128) bf16
    b_ref : (1, 128) f32       wo_ref: (128, 4) bf16
    out_ref: (tb, 4) f32
    """
    # bf16 operands -> native single-pass MXU; f32 accumulation for accuracy.
    h = jnp.dot(x_ref[...], wx_ref[...], preferred_element_type=jnp.float32)
    h = h + jnp.dot(y_ref[...], wy_ref[...], preferred_element_type=jnp.float32)
    h = jnp.maximum(h + b_ref[...], 0.0)                 # bias + ReLU in f32 (VPU)
    out = jnp.dot(h.astype(jnp.bfloat16), wo_ref[...],
                  preferred_element_type=jnp.float32)
    out_ref[...] = out.astype(out_ref.dtype)


def prepare_params(w_cat, b_cat, w_out, weight_dtype=jnp.bfloat16):
    """One-time parameter layout / quantization (hoisted out of the forward path).

    w_cat: (128, 1792), b_cat: (128,), w_out: (4, 128)
    Returns wx (1024,128) bf16, wy (768,128) bf16, b (1,128) f32, wo (128,4) bf16.
    """
    wx = jnp.asarray(w_cat[:, :X_DIM].T, dtype=weight_dtype)
    wy = jnp.asarray(w_cat[:, X_DIM:].T, dtype=weight_dtype)
    b = b_cat.reshape(1, FUSE_DIM).astype(jnp.float32)
    wo = jnp.asarray(w_out.T, dtype=weight_dtype)
    return wx, wy, b, wo


def _choose_batch_tile(B):
    """Batch tile: multiple of 8 sublanes, <= TILE_B, >= 2 grid steps when possible
    (keeps both v7x TensorCores busy via the "parallel" batch axis)."""
    if B <= 16:
        return B                       # full-extent block for toy batches (legal)
    tb = min(TILE_B, pl.cdiv(B, 2))    # guarantee at least 2 grid steps
    tb = ((tb + 7) // 8) * 8           # sublane-aligned
    return min(tb, TILE_B)


def lhs_forward(x_cls, y_cls, wx, wy, b, wo):
    """x_cls: (B,1024), y_cls: (B,768); weights pre-laid-out by prepare_params.

    Activations are cast to bf16 OUTSIDE the kernel so the pallas_call DMA
    moves half the bytes (the kernel is HBM-bound on activation traffic).
    """
    B = x_cls.shape[0]
    x_cls = x_cls.astype(jnp.bfloat16)
    y_cls = y_cls.astype(jnp.bfloat16)

    tb = _choose_batch_tile(B)
    grid = (pl.cdiv(B, tb),)

    # Advisory cost hint for XLA's scheduler around the custom call.
    flops = 2 * B * (X_DIM * FUSE_DIM + Y_DIM * FUSE_DIM + FUSE_DIM * OUT_DIM)
    bytes_accessed = (
        B * (X_DIM + Y_DIM) * 2            # bf16 activations in
        + B * OUT_DIM * 4                  # f32 output
        + (X_DIM + Y_DIM) * FUSE_DIM * 2   # bf16 fused weights
        + FUSE_DIM * 4                     # f32 bias
        + FUSE_DIM * OUT_DIM * 2)          # bf16 output projection

    out = pl.pallas_call(
        lhs_kernel,
        out_shape=jax.ShapeDtypeStruct((B, OUT_DIM), jnp.float32),
        grid_spec=pltpu.PrefetchScalarGridSpec(
            num_scalar_prefetch=0,
            grid=grid,
            in_specs=[
                pl.BlockSpec((tb, X_DIM), lambda i: (i, 0)),        # bf16 activations, batch-tiled
                pl.BlockSpec((tb, Y_DIM), lambda i: (i, 0)),
                pl.BlockSpec((X_DIM, FUSE_DIM), lambda i: (0, 0)),  # weights VMEM-resident
                pl.BlockSpec((Y_DIM, FUSE_DIM), lambda i: (0, 0)),
                pl.BlockSpec((1, FUSE_DIM), lambda i: (0, 0)),
                pl.BlockSpec((FUSE_DIM, OUT_DIM), lambda i: (0, 0)),
            ],
            out_specs=pl.BlockSpec((tb, OUT_DIM), lambda i: (i, 0)),
        ),
        compiler_params=pltpu.CompilerParams(
            dimension_semantics=("parallel",),     # megacore / v7x 2-TC sharding
            vmem_limit_bytes=32 * 1024 * 1024),    # safe on v5e/v6e/v7x; >> actual need
        cost_estimate=pl.CostEstimate(
            flops=flops, transcendentals=0, bytes_accessed=bytes_accessed),
    )(x_cls, y_cls, wx, wy, b, wo)

    # The PyTorch module returns (out, torch.empty(1)); use zeros for determinism.
    return out, jnp.zeros((1,), dtype=jnp.float32)


def reference_forward(x_cls, y_cls, w_cat, b_cat, w_out):
    """Reference with the same bf16 operand quantization, f32 math."""
    xq = x_cls.astype(jnp.bfloat16).astype(jnp.float32)
    yq = y_cls.astype(jnp.bfloat16).astype(jnp.float32)
    wq = w_cat.astype(jnp.bfloat16).astype(jnp.float32)
    cat = jnp.concatenate([xq, yq], axis=1)
    h = jax.nn.relu(cat @ wq.T + b_cat)
    hq = h.astype(jnp.bfloat16).astype(jnp.float32)
    woq = w_out.astype(jnp.bfloat16).astype(jnp.float32)
    return hq @ woq.T


if __name__ == "__main__":
    key = jax.random.PRNGKey(0)
    kx, ky, kwc, kbc, kwo = jax.random.split(key, 5)

    B = 2
    # Synthetic CLS features standing in for the backbone outputs.
    x_cls = jax.random.normal(kx, (B, X_DIM), dtype=jnp.float32)
    y_cls = jax.random.normal(ky, (B, Y_DIM), dtype=jnp.float32)

    # Deterministic parameter init (Linear-like scaling).
    w_cat = jax.random.normal(kwc, (FUSE_DIM, X_DIM + Y_DIM), jnp.float32) * (1.0 / (X_DIM + Y_DIM) ** 0.5)
    b_cat = jax.random.normal(kbc, (FUSE_DIM,), jnp.float32) * 0.01
    w_out = jax.random.normal(kwo, (OUT_DIM, FUSE_DIM), jnp.float32) * (1.0 / FUSE_DIM ** 0.5)

    # One-time weight layout / bf16 quantization, outside the forward path.
    wx, wy, b, wo = prepare_params(w_cat, b_cat, w_out)

    out, empty = lhs_forward(x_cls, y_cls, wx, wy, b, wo)
    out = jax.block_until_ready(out)

    ref = reference_forward(x_cls, y_cls, w_cat, b_cat, w_out)
    assert out.shape == (B, OUT_DIM)
    assert empty.shape == (1,)
    # Same bf16-quantized operands on both sides; residual diff is accumulation order.
    assert jnp.allclose(out, ref, atol=1e-2, rtol=1e-2), "mismatch vs reference"

    print("KERNEL_OK")
</pallas_src>

<mosaic_0001>
module attributes {stable_mosaic.version = 11 : i64} {
  func.func @lhs_kernel(%arg0: i32, %arg1: memref<2x1024xbf16, #tpu.memory_space<vmem>>, %arg2: memref<2x768xbf16, #tpu.memory_space<vmem>>, %arg3: memref<1024x128xbf16, #tpu.memory_space<vmem>>, %arg4: memref<768x128xbf16, #tpu.memory_space<vmem>>, %arg5: memref<1x128xf32, #tpu.memory_space<vmem>>, %arg6: memref<128x4xbf16, #tpu.memory_space<vmem>>, %arg7: memref<2x4xf32, #tpu.memory_space<vmem>>) attributes {dimension_semantics = [#tpu.dimension_semantics<parallel>], iteration_bounds = array<i64: 1>, scalar_prefetch = 0 : i64, scratch_operands = 0 : i64, tpu.core_type = #tpu.core_type<tc>, window_params = [{transform_indices = @transform_0, window_bounds = array<i64: 2, 1024>}, {transform_indices = @transform_1, window_bounds = array<i64: 2, 768>}, {pipeline_mode = #tpu.pipeline_mode<synchronous>, transform_indices = @transform_2, window_bounds = array<i64: 1024, 128>}, {pipeline_mode = #tpu.pipeline_mode<synchronous>, transform_indices = @transform_3, window_bounds = array<i64: 768, 128>}, {pipeline_mode = #tpu.pipeline_mode<synchronous>, transform_indices = @transform_4, window_bounds = array<i64: 1, 128>}, {pipeline_mode = #tpu.pipeline_mode<synchronous>, transform_indices = @transform_5, window_bounds = array<i64: 128, 4>}, {transform_indices = @transform_6, window_bounds = array<i64: 2, 4>}]} {
    %c0 = arith.constant 0 : index
    %c0_0 = arith.constant 0 : index
    %0 = vector.load %arg1[%c0, %c0_0] : memref<2x1024xbf16, #tpu.memory_space<vmem>>, vector<2x1024xbf16>
    %c0_1 = arith.constant 0 : index
    %c0_2 = arith.constant 0 : index
    %1 = vector.load %arg3[%c0_1, %c0_2] : memref<1024x128xbf16, #tpu.memory_space<vmem>>, vector<1024x128xbf16>
    %cst = arith.constant dense<0.000000e+00> : vector<2x128xf32>
    %2 = tpu.matmul %0, %1, %cst {dimension_numbers = #tpu.dot_dimension_numbers<[1], [0], [0], [1], [0, 0, 1, 1], [], []>} : vector<2x1024xbf16>, vector<1024x128xbf16>, vector<2x128xf32> -> vector<2x128xf32>
    %c0_3 = arith.constant 0 : index
    %c0_4 = arith.constant 0 : index
    %3 = vector.load %arg2[%c0_3, %c0_4] : memref<2x768xbf16, #tpu.memory_space<vmem>>, vector<2x768xbf16>
    %c0_5 = arith.constant 0 : index
    %c0_6 = arith.constant 0 : index
    %4 = vector.load %arg4[%c0_5, %c0_6] : memref<768x128xbf16, #tpu.memory_space<vmem>>, vector<768x128xbf16>
    %cst_7 = arith.constant dense<0.000000e+00> : vector<2x128xf32>
    %5 = tpu.matmul %3, %4, %cst_7 {dimension_numbers = #tpu.dot_dimension_numbers<[1], [0], [0], [1], [0, 0, 1, 1], [], []>} : vector<2x768xbf16>, vector<768x128xbf16>, vector<2x128xf32> -> vector<2x128xf32>
    %6 = arith.addf %2, %5 : vector<2x128xf32>
    %c0_8 = arith.constant 0 : index
    %c0_9 = arith.constant 0 : index
    %7 = vector.load %arg5[%c0_8, %c0_9] : memref<1x128xf32, #tpu.memory_space<vmem>>, vector<1x128xf32>
    %8 = vector.broadcast %7 : vector<1x128xf32> to vector<2x128xf32>
    %9 = arith.addf %6, %8 : vector<2x128xf32>
    %cst_10 = arith.constant 0.000000e+00 : f32
    %10 = vector.broadcast %cst_10 : f32 to vector<2x128xf32>
    %11 = arith.maximumf %9, %10 : vector<2x128xf32>
    %12 = arith.truncf %11 : vector<2x128xf32> to vector<2x128xbf16>
    %c0_11 = arith.constant 0 : index
    %c0_12 = arith.constant 0 : index
    %13 = vector.load %arg6[%c0_11, %c0_12] : memref<128x4xbf16, #tpu.memory_space<vmem>>, vector<128x4xbf16>
    %cst_13 = arith.constant dense<0.000000e+00> : vector<2x4xf32>
    %14 = tpu.matmul %12, %13, %cst_13 {dimension_numbers = #tpu.dot_dimension_numbers<[1], [0], [0], [1], [0, 0, 1, 1], [], []>} : vector<2x128xbf16>, vector<128x4xbf16>, vector<2x4xf32> -> vector<2x4xf32>
    %c0_14 = arith.constant 0 : index
    %c0_15 = arith.constant 0 : index
    %15 = vector.load %arg7[%c0_14, %c0_15] : memref<2x4xf32, #tpu.memory_space<vmem>>, vector<2x4xf32>
    tpu.vector_store %arg7[%c0_14, %c0_15], %14 {strides = array<i32>} : memref<2x4xf32, #tpu.memory_space<vmem>>, vector<2x4xf32>,
    return
  }
  func.func @transform_0(%arg0: i32) -> (i32, i32) {
    %c0_i32 = arith.constant 0 : i32
    %c0_i32_0 = arith.constant 0 : i32
    return %arg0, %c0_i32 : i32, i32
  }
  func.func @transform_1(%arg0: i32) -> (i32, i32) {
    %c0_i32 = arith.constant 0 : i32
    %c0_i32_0 = arith.constant 0 : i32
    return %arg0, %c0_i32 : i32, i32
  }
  func.func @transform_2(%arg0: i32) -> (i32, i32) {
    %c0_i32 = arith.constant 0 : i32
    %c0_i32_0 = arith.constant 0 : i32
    %c0_i32_1 = arith.constant 0 : i32
    return %c0_i32, %c0_i32_0 : i32, i32
  }
  func.func @transform_3(%arg0: i32) -> (i32, i32) {
    %c0_i32 = arith.constant 0 : i32
    %c0_i32_0 = arith.constant 0 : i32
    %c0_i32_1 = arith.constant 0 : i32
    return %c0_i32, %c0_i32_0 : i32, i32
  }
  func.func @transform_4(%arg0: i32) -> (i32, i32) {
    %c0_i32 = arith.constant 0 : i32
    %c0_i32_0 = arith.constant 0 : i32
    %c0_i32_1 = arith.constant 0 : i32
    return %c0_i32, %c0_i32_0 : i32, i32
  }
  func.func @transform_5(%arg0: i32) -> (i32, i32) {
    %c0_i32 = arith.constant 0 : i32
    %c0_i32_0 = arith.constant 0 : i32
    %c0_i32_1 = arith.constant 0 : i32
    return %c0_i32, %c0_i32_0 : i32, i32
  }
  func.func @transform_6(%arg0: i32) -> (i32, i32) {
    %c0_i32 = arith.constant 0 : i32
    %c0_i32_0 = arith.constant 0 : i32
    return %arg0, %c0_i32 : i32, i32
  }
}

</mosaic_0001>

<llo_original>
// kernel: tpu_custom_call.1
$region0: #{tpu_custom_call.1}
  #allocation0 [shape = 'u32[]', space=smem, size = 0x4, offset = 0x4, fixed_abs, tag = 'smem constant byte address 0x4 - core index']
  #allocation1 [shape = 'u32[144,128]{1,0:T(1,128)}', space=vmem, size = 0x12000, scoped, tag = 'internal scratch']
  %s0 = inlined_call_operand.vmem [shape: bf16[2,1024], index: 0, kind: input, shape index: {}]
  %s1 = inlined_call_operand.vmem [shape: bf16[2,768], index: 1, kind: input, shape index: {}]
  %s2 = inlined_call_operand.hbm [shape: bf16[1024,128], index: 2, kind: input, shape index: {}]
  %s3 = inlined_call_operand.hbm [shape: bf16[768,128], index: 3, kind: input, shape index: {}]
  %s4 = inlined_call_operand.vmem [shape: f32[1,128], index: 4, kind: input, shape index: {}]
  %s5 = inlined_call_operand.vmem [shape: bf16[128,4], index: 5, kind: input, shape index: {}]
  %s6 = inlined_call_operand.hbm [shape: f32[2,4], index: 6, kind: output, shape index: {}]
  %s7 = sld [smem:[#allocation0]]
  $region42: #{tpu_custom_call.1} parent=0
    _
  %s9 = ssub.s32 1, %s7
  %s10 = scalar_select 0, %s9, %s7
  $region1: #{tpu_custom_call.1} parent=0
    #allocation2 [shape = 'u8[262144]{0}', space=vmem, size = 0x40000, scoped, tag = 'input window, operand 2, single buffered']
    #allocation3 [shape = 's32[1]{0}', space=sflag, size = 0x4, scoped, tag = 'scoped memory for tpu_custom_call.1']
    #allocation4 [shape = 's32[1]{0}', space=sflag, size = 0x4, scoped, tag = 'scoped memory for tpu_custom_call.1']
    #allocation5 [shape = 'u8[196608]{0}', space=vmem, size = 0x30000, scoped, tag = 'input window, operand 3, single buffered']
    #allocation6 [shape = 's32[1]{0}', space=sflag, size = 0x4, scoped, tag = 'scoped memory for tpu_custom_call.1']
    #allocation7 [shape = 'u8[1024]{0}', space=vmem, size = 0x400, scoped, tag = 'output window, operand 0, single buffered']
    %11 = vsyncpa [#allocation3], 0
    %12 = vsyncpa [#allocation6], 0
    %13 = vsyncpa [#allocation4], 0
    // Predicated region
    $region2: #{tpu_custom_call.1} parent=1 // pred_check
      _
    $region3: #{tpu_custom_call.1} parent=1 // pred_check_branch
      %15 = sbr.rel (0) target = $region5
    $region4: #{tpu_custom_call.1} parent=1 // pred_region
      _
    $region5: #{tpu_custom_call.1} parent=1 // pred_fallthru
      _
    // Predicated region
    $region6: #{tpu_custom_call.1} parent=1 // pred_check
      _
    $region7: #{tpu_custom_call.1} parent=1 // pred_check_branch
      %17 = sbr.rel (0) target = $region9
    $region8: #{tpu_custom_call.1} parent=1 // pred_region
      _
    $region9: #{tpu_custom_call.1} parent=1 // pred_fallthru
      _
    // Predicated region
    $region10: #{tpu_custom_call.1} parent=1 // pred_check
      _
    $region11: #{tpu_custom_call.1} parent=1 // pred_check_branch
      %19 = sbr.rel (0) target = $region13
    $region12: #{tpu_custom_call.1} parent=1 // pred_region
      %s21 = ssub.s32 8192, 8192
      %22 = vsyncadd [#allocation3], %s21
      %s23 = sshll.u32 [#allocation2], 4
      %s24 = int_to_ptr.vmem [resolvable:$true] %s23
      %29 = dma.hbm_to_vmem [thread:$0]  %s2, 8192, %s24, [#allocation3], 64, 64, 4
    $region13: #{tpu_custom_call.1} parent=1 // pred_fallthru
      _
    // Predicated region
    $region14: #{tpu_custom_call.1} parent=1 // pred_check
      _
    $region15: #{tpu_custom_call.1} parent=1 // pred_check_branch
      %31 = sbr.rel (0) target = $region17
    $region16: #{tpu_custom_call.1} parent=1 // pred_region
      %s33 = ssub.s32 6144, 6144
      %34 = vsyncadd [#allocation6], %s33
      %s35 = sshll.u32 [#allocation5], 4
      %s36 = int_to_ptr.vmem [resolvable:$true] %s35
      %41 = dma.hbm_to_vmem [thread:$0]  %s3, 6144, %s36, [#allocation6], 64, 64, 4
    $region17: #{tpu_custom_call.1} parent=1 // pred_fallthru
      _
    // Predicated region
    $region18: #{tpu_custom_call.1} parent=1 // pred_check
      _
    $region19: #{tpu_custom_call.1} parent=1 // pred_check_branch
      %43 = sbr.rel (0) target = $region21
    $region20: #{tpu_custom_call.1} parent=1 // pred_region
      _
    $region21: #{tpu_custom_call.1} parent=1 // pred_fallthru
      _
    // Predicated region
    $region22: #{tpu_custom_call.1} parent=1 // pred_check
      _
    $region23: #{tpu_custom_call.1} parent=1 // pred_check_branch
      %45 = sbr.rel (0) target = $region25
    $region24: #{tpu_custom_call.1} parent=1 // pred_region
      _
    $region25: #{tpu_custom_call.1} parent=1 // pred_fallthru
      _
    // Predicated region
    $region26: #{tpu_custom_call.1} parent=1 // pred_check
      _
    $region27: #{tpu_custom_call.1} parent=1 // pred_check_branch
      %47 = sbr.rel (0) target = $region29
    $region28: #{tpu_custom_call.1} parent=1 // pred_region
      %48 = dma.done [#allocation3], 8192
    $region29: #{tpu_custom_call.1} parent=1 // pred_fallthru
      _
    // Predicated region
    $region30: #{tpu_custom_call.1} parent=1 // pred_check
      _
    $region31: #{tpu_custom_call.1} parent=1 // pred_check_branch
      %50 = sbr.rel (0) target = $region33
    $region32: #{tpu_custom_call.1} parent=1 // pred_region
      %51 = dma.done [#allocation6], 6144
    $region33: #{tpu_custom_call.1} parent=1 // pred_fallthru
      _
    %v53 = vld [vmem:[%s0] sm:$0xff]
    %v54 = vld [vmem:[#allocation2] sm:$0xf]
    %v55 = vld [vmem:[#allocation2 + $0x4] sm:$0xf]
    %v56 = vld [vmem:[#allocation2 + $0x8] sm:$0xf]
    %v57 = vld [vmem:[#allocation2 + $0xc] sm:$0xf]
    %v58 = vld [vmem:[#allocation2 + $0x10] sm:$0xf]
    %v59 = vld [vmem:[#allocation2 + $0x14] sm:$0xf]
    %v60 = vld [vmem:[#allocation2 + $0x18] sm:$0xf]
    %v61 = vld [vmem:[#allocation2 + $0x1c] sm:$0xf]
    %v62 = vld [vmem:[#allocation2 + $0x20] sm:$0xf]
    %v63 = vld [vmem:[#allocation2 + $0x24] sm:$0xf]
    %v64 = vld [vmem:[#allocation2 + $0x28] sm:$0xf]
    %v65 = vld [vmem:[#allocation2 + $0x2c] sm:$0xf]
    %v66 = vld [vmem:[#allocation2 + $0x30] sm:$0xf]
    %v67 = vld [vmem:[#allocation2 + $0x34] sm:$0xf]
    %v68 = vld [vmem:[#allocation2 + $0x38] sm:$0xf]
    %v69 = vld [vmem:[#allocation2 + $0x3c] sm:$0xf]
    %v70 = vld [vmem:[#allocation2 + $0x40] sm:$0xf]
    %v71 = vld [vmem:[#allocation2 + $0x44] sm:$0xf]
    %v72 = vld [vmem:[#allocation2 + $0x48] sm:$0xf]
    %v73 = vld [vmem:[#allocation2 + $0x4c] sm:$0xf]
    %v74 = vld [vmem:[#allocation2 + $0x50] sm:$0xf]
    %v75 = vld [vmem:[#allocation2 + $0x54] sm:$0xf]
    %v76 = vld [vmem:[#allocation2 + $0x58] sm:$0xf]
    %v77 = vld [vmem:[#allocation2 + $0x5c] sm:$0xf]
    %v78 = vld [vmem:[#allocation2 + $0x60] sm:$0xf]
    %v79 = vld [vmem:[#allocation2 + $0x64] sm:$0xf]
    %v80 = vld [vmem:[#allocation2 + $0x68] sm:$0xf]
    %v81 = vld [vmem:[#allocation2 + $0x6c] sm:$0xf]
    %v82 = vld [vmem:[#allocation2 + $0x70] sm:$0xf]
    %v83 = vld [vmem:[#allocation2 + $0x74] sm:$0xf]
    %v84 = vld [vmem:[#allocation2 + $0x78] sm:$0xf]
    %v85 = vld [vmem:[#allocation2 + $0x7c] sm:$0xf]
    %v86 = vld [vmem:[#allocation2 + $0x80] sm:$0xf]
    %v87 = vld [vmem:[#allocation2 + $0x84] sm:$0xf]
    %v88 = vld [vmem:[#allocation2 + $0x88] sm:$0xf]
    %v89 = vld [vmem:[#allocation2 + $0x8c] sm:$0xf]
    %v90 = vld [vmem:[#allocation2 + $0x90] sm:$0xf]
    %v91 = vld [vmem:[#allocation2 + $0x94] sm:$0xf]
    %v92 = vld [vmem:[#allocation2 + $0x98] sm:$0xf]
    %v93 = vld [vmem:[#allocation2 + $0x9c] sm:$0xf]
    %v94 = vld [vmem:[#allocation2 + $0xa0] sm:$0xf]
    %v95 = vld [vmem:[#allocation2 + $0xa4] sm:$0xf]
    %v96 = vld [vmem:[#allocation2 + $0xa8] sm:$0xf]
    %v97 = vld [vmem:[#allocation2 + $0xac] sm:$0xf]
    %v98 = vld [vmem:[#allocation2 + $0xb0] sm:$0xf]
    %v99 = vld [vmem:[#allocation2 + $0xb4] sm:$0xf]
    %v100 = vld [vmem:[#allocation2 + $0xb8] sm:$0xf]
    %v101 = vld [vmem:[#allocation2 + $0xbc] sm:$0xf]
    %v102 = vld [vmem:[#allocation2 + $0xc0] sm:$0xf]
    %v103 = vld [vmem:[#allocation2 + $0xc4] sm:$0xf]
    %v104 = vld [vmem:[#allocation2 + $0xc8] sm:$0xf]
    %v105 = vld [vmem:[#allocation2 + $0xcc] sm:$0xf]
    %v106 = vld [vmem:[#allocation2 + $0xd0] sm:$0xf]
    %v107 = vld [vmem:[#allocation2 + $0xd4] sm:$0xf]
    %v108 = vld [vmem:[#allocation2 + $0xd8] sm:$0xf]
    %v109 = vld [vmem:[#allocation2 + $0xdc] sm:$0xf]
    %v110 = vld [vmem:[#allocation2 + $0xe0] sm:$0xf]
    %v111 = vld [vmem:[#allocation2 + $0xe4] sm:$0xf]
    %v112 = vld [vmem:[#allocation2 + $0xe8] sm:$0xf]
    %v113 = vld [vmem:[#allocation2 + $0xec] sm:$0xf]
    %v114 = vld [vmem:[#allocation2 + $0xf0] sm:$0xf]
    %v115 = vld [vmem:[#allocation2 + $0xf4] sm:$0xf]
    %v116 = vld [vmem:[#allocation2 + $0xf8] sm:$0xf]
    %v117 = vld [vmem:[#allocation2 + $0xfc] sm:$0xf]
    %v118 = vld [vmem:[#allocation2 + $0x100] sm:$0xf]
    %v119 = vld [vmem:[#allocation2 + $0x104] sm:$0xf]
    %v120 = vld [vmem:[#allocation2 + $0x108] sm:$0xf]
    %v121 = vld [vmem:[#allocation2 + $0x10c] sm:$0xf]
    %v122 = vld [vmem:[#allocation2 + $0x110] sm:$0xf]
    %v123 = vld [vmem:[#allocation2 + $0x114] sm:$0xf]
    %v124 = vld [vmem:[#allocation2 + $0x118] sm:$0xf]
    %v125 = vld [vmem:[#allocation2 + $0x11c] sm:$0xf]
    %v126 = vld [vmem:[#allocation2 + $0x120] sm:$0xf]
    %v127 = vld [vmem:[#allocation2 + $0x124] sm:$0xf]
    %v128 = vld [vmem:[#allocation2 + $0x128] sm:$0xf]
    %v129 = vld [vmem:[#allocation2 + $0x12c] sm:$0xf]
    %v130 = vld [vmem:[#allocation2 + $0x130] sm:$0xf]
    %v131 = vld [vmem:[#allocation2 + $0x134] sm:$0xf]
    %v132 = vld [vmem:[#allocation2 + $0x138] sm:$0xf]
    %v133 = vld [vmem:[#allocation2 + $0x13c] sm:$0xf]
    %v134 = vld [vmem:[#allocation2 + $0x140] sm:$0xf]
    %v135 = vld [vmem:[#allocation2 + $0x144] sm:$0xf]
    %v136 = vld [vmem:[#allocation2 + $0x148] sm:$0xf]
    %v137 = vld [vmem:[#allocation2 + $0x14c] sm:$0xf]
    %v138 = vld [vmem:[#allocation2 + $0x150] sm:$0xf]
    %v139 = vld [vmem:[#allocation2 + $0x154] sm:$0xf]
    %v140 = vld [vmem:[#allocation2 + $0x158] sm:$0xf]
    %v141 = vld [vmem:[#allocation2 + $0x15c] sm:$0xf]
    %v142 = vld [vmem:[#allocation2 + $0x160] sm:$0xf]
    %v143 = vld [vmem:[#allocation2 + $0x164] sm:$0xf]
    %v144 = vld [vmem:[#allocation2 + $0x168] sm:$0xf]
    %v145 = vld [vmem:[#allocation2 + $0x16c] sm:$0xf]
    %v146 = vld [vmem:[#allocation2 + $0x170] sm:$0xf]
    %v147 = vld [vmem:[#allocation2 + $0x174] sm:$0xf]
    %v148 = vld [vmem:[#allocation2 + $0x178] sm:$0xf]
    %v149 = vld [vmem:[#allocation2 + $0x17c] sm:$0xf]
    %v150 = vld [vmem:[#allocation2 + $0x180] sm:$0xf]
    %v151 = vld [vmem:[#allocation2 + $0x184] sm:$0xf]
    %v152 = vld [vmem:[#allocation2 + $0x188] sm:$0xf]
    %v153 = vld [vmem:[#allocation2 + $0x18c] sm:$0xf]
    %v154 = vld [vmem:[#allocation2 + $0x190] sm:$0xf]
    %v155 = vld [vmem:[#allocation2 + $0x194] sm:$0xf]
    %v156 = vld [vmem:[#allocation2 + $0x198] sm:$0xf]
    %v157 = vld [vmem:[#allocation2 + $0x19c] sm:$0xf]
    %v158 = vld [vmem:[#allocation2 + $0x1a0] sm:$0xf]
    %v159 = vld [vmem:[#allocation2 + $0x1a4] sm:$0xf]
    %v160 = vld [vmem:[#allocation2 + $0x1a8] sm:$0xf]
    %v161 = vld [vmem:[#allocation2 + $0x1ac] sm:$0xf]
    %v162 = vld [vmem:[#allocation2 + $0x1b0] sm:$0xf]
    %v163 = vld [vmem:[#allocation2 + $0x1b4] sm:$0xf]
    %v164 = vld [vmem:[#allocation2 + $0x1b8] sm:$0xf]
    %v165 = vld [vmem:[#allocation2 + $0x1bc] sm:$0xf]
    %v166 = vld [vmem:[#allocation2 + $0x1c0] sm:$0xf]
    %v167 = vld [vmem:[#allocation2 + $0x1c4] sm:$0xf]
    %v168 = vld [vmem:[#allocation2 + $0x1c8] sm:$0xf]
    %v169 = vld [vmem:[#allocation2 + $0x1cc] sm:$0xf]
    %v170 = vld [vmem:[#allocation2 + $0x1d0] sm:$0xf]
    %v171 = vld [vmem:[#allocation2 + $0x1d4] sm:$0xf]
    %v172 = vld [vmem:[#allocation2 + $0x1d8] sm:$0xf]
    %v173 = vld [vmem:[#allocation2 + $0x1dc] sm:$0xf]
    %v174 = vld [vmem:[#allocation2 + $0x1e0] sm:$0xf]
    %v175 = vld [vmem:[#allocation2 + $0x1e4] sm:$0xf]
    %v176 = vld [vmem:[#allocation2 + $0x1e8] sm:$0xf]
    %v177 = vld [vmem:[#allocation2 + $0x1ec] sm:$0xf]
    %v178 = vld [vmem:[#allocation2 + $0x1f0] sm:$0xf]
    %v179 = vld [vmem:[#allocation2 + $0x1f4] sm:$0xf]
    %v180 = vld [vmem:[#allocation2 + $0x1f8] sm:$0xf]
    %v181 = vld [vmem:[#allocation2 + $0x1fc] sm:$0xf]
    %v182 = vld [vmem:[%s1] sm:$0x3f]
    %v183 = vld [vmem:[#allocation5] sm:$0xf]
    %v184 = vld [vmem:[#allocation5 + $0x4] sm:$0xf]
    %v185 = vld [vmem:[#allocation5 + $0x8] sm:$0xf]
    %v186 = vld [vmem:[#allocation5 + $0xc] sm:$0xf]
    %v187 = vld [vmem:[#allocation5 + $0x10] sm:$0xf]
    %v188 = vld [vmem:[#allocation5 + $0x14] sm:$0xf]
    %v189 = vld [vmem:[#allocation5 + $0x18] sm:$0xf]
    %v190 = vld [vmem:[#allocation5 + $0x1c] sm:$0xf]
    %v191 = vld [vmem:[#allocation5 + $0x20] sm:$0xf]
    %v192 = vld [vmem:[#allocation5 + $0x24] sm:$0xf]
    %v193 = vld [vmem:[#allocation5 + $0x28] sm:$0xf]
    %v194 = vld [vmem:[#allocation5 + $0x2c] sm:$0xf]
    %v195 = vld [vmem:[#allocation5 + $0x30] sm:$0xf]
    %v196 = vld [vmem:[#allocation5 + $0x34] sm:$0xf]
    %v197 = vld [vmem:[#allocation5 + $0x38] sm:$0xf]
    %v198 = vld [vmem:[#allocation5 + $0x3c] sm:$0xf]
    %v199 = vld [vmem:[#allocation5 + $0x40] sm:$0xf]
    %v200 = vld [vmem:[#allocation5 + $0x44] sm:$0xf]
    %v201 = vld [vmem:[#allocation5 + $0x48] sm:$0xf]
    %v202 = vld [vmem:[#allocation5 + $0x4c] sm:$0xf]
    %v203 = vld [vmem:[#allocation5 + $0x50] sm:$0xf]
    %v204 = vld [vmem:[#allocation5 + $0x54] sm:$0xf]
    %v205 = vld [vmem:[#allocation5 + $0x58] sm:$0xf]
    %v206 = vld [vmem:[#allocation5 + $0x5c] sm:$0xf]
    %v207 = vld [vmem:[#allocation5 + $0x60] sm:$0xf]
    %v208 = vld [vmem:[#allocation5 + $0x64] sm:$0xf]
    %v209 = vld [vmem:[#allocation5 + $0x68] sm:$0xf]
    %v210 = vld [vmem:[#allocation5 + $0x6c] sm:$0xf]
    %v211 = vld [vmem:[#allocation5 + $0x70] sm:$0xf]
    %v212 = vld [vmem:[#allocation5 + $0x74] sm:$0xf]
    %v213 = vld [vmem:[#allocation5 + $0x78] sm:$0xf]
    %v214 = vld [vmem:[#allocation5 + $0x7c] sm:$0xf]
    %v215 = vld [vmem:[#allocation5 + $0x80] sm:$0xf]
    %v216 = vld [vmem:[#allocation5 + $0x84] sm:$0xf]
    %v217 = vld [vmem:[#allocation5 + $0x88] sm:$0xf]
    %v218 = vld [vmem:[#allocation5 + $0x8c] sm:$0xf]
    %v219 = vld [vmem:[#allocation5 + $0x90] sm:$0xf]
    %v220 = vld [vmem:[#allocation5 + $0x94] sm:$0xf]
    %v221 = vld [vmem:[#allocation5 + $0x98] sm:$0xf]
    %v222 = vld [vmem:[#allocation5 + $0x9c] sm:$0xf]
    %v223 = vld [vmem:[#allocation5 + $0xa0] sm:$0xf]
    %v224 = vld [vmem:[#allocation5 + $0xa4] sm:$0xf]
    %v225 = vld [vmem:[#allocation5 + $0xa8] sm:$0xf]
    %v226 = vld [vmem:[#allocation5 + $0xac] sm:$0xf]
    %v227 = vld [vmem:[#allocation5 + $0xb0] sm:$0xf]
    %v228 = vld [vmem:[#allocation5 + $0xb4] sm:$0xf]
    %v229 = vld [vmem:[#allocation5 + $0xb8] sm:$0xf]
    %v230 = vld [vmem:[#allocation5 + $0xbc] sm:$0xf]
    %v231 = vld [vmem:[#allocation5 + $0xc0] sm:$0xf]
    %v232 = vld [vmem:[#allocation5 + $0xc4] sm:$0xf]
    %v233 = vld [vmem:[#allocation5 + $0xc8] sm:$0xf]
    %v234 = vld [vmem:[#allocation5 + $0xcc] sm:$0xf]
    %v235 = vld [vmem:[#allocation5 + $0xd0] sm:$0xf]
    %v236 = vld [vmem:[#allocation5 + $0xd4] sm:$0xf]
    %v237 = vld [vmem:[#allocation5 + $0xd8] sm:$0xf]
    %v238 = vld [vmem:[#allocation5 + $0xdc] sm:$0xf]
    %v239 = vld [vmem:[#allocation5 + $0xe0] sm:$0xf]
    %v240 = vld [vmem:[#allocation5 + $0xe4] sm:$0xf]
    %v241 = vld [vmem:[#allocation5 + $0xe8] sm:$0xf]
    %v242 = vld [vmem:[#allocation5 + $0xec] sm:$0xf]
    %v243 = vld [vmem:[#allocation5 + $0xf0] sm:$0xf]
    %v244 = vld [vmem:[#allocation5 + $0xf4] sm:$0xf]
    %v245 = vld [vmem:[#allocation5 + $0xf8] sm:$0xf]
    %v246 = vld [vmem:[#allocation5 + $0xfc] sm:$0xf]
    %v247 = vld [vmem:[#allocation5 + $0x100] sm:$0xf]
    %v248 = vld [vmem:[#allocation5 + $0x104] sm:$0xf]
    %v249 = vld [vmem:[#allocation5 + $0x108] sm:$0xf]
    %v250 = vld [vmem:[#allocation5 + $0x10c] sm:$0xf]
    %v251 = vld [vmem:[#allocation5 + $0x110] sm:$0xf]
    %v252 = vld [vmem:[#allocation5 + $0x114] sm:$0xf]
    %v253 = vld [vmem:[#allocation5 + $0x118] sm:$0xf]
    %v254 = vld [vmem:[#allocation5 + $0x11c] sm:$0xf]
    %v255 = vld [vmem:[#allocation5 + $0x120] sm:$0xf]
    %v256 = vld [vmem:[#allocation5 + $0x124] sm:$0xf]
    %v257 = vld [vmem:[#allocation5 + $0x128] sm:$0xf]
    %v258 = vld [vmem:[#allocation5 + $0x12c] sm:$0xf]
    %v259 = vld [vmem:[#allocation5 + $0x130] sm:$0xf]
    %v260 = vld [vmem:[#allocation5 + $0x134] sm:$0xf]
    %v261 = vld [vmem:[#allocation5 + $0x138] sm:$0xf]
    %v262 = vld [vmem:[#allocation5 + $0x13c] sm:$0xf]
    %v263 = vld [vmem:[#allocation5 + $0x140] sm:$0xf]
    %v264 = vld [vmem:[#allocation5 + $0x144] sm:$0xf]
    %v265 = vld [vmem:[#allocation5 + $0x148] sm:$0xf]
    %v266 = vld [vmem:[#allocation5 + $0x14c] sm:$0xf]
    %v267 = vld [vmem:[#allocation5 + $0x150] sm:$0xf]
    %v268 = vld [vmem:[#allocation5 + $0x154] sm:$0xf]
    %v269 = vld [vmem:[#allocation5 + $0x158] sm:$0xf]
    %v270 = vld [vmem:[#allocation5 + $0x15c] sm:$0xf]
    %v271 = vld [vmem:[#allocation5 + $0x160] sm:$0xf]
    %v272 = vld [vmem:[#allocation5 + $0x164] sm:$0xf]
    %v273 = vld [vmem:[#allocation5 + $0x168] sm:$0xf]
    %v274 = vld [vmem:[#allocation5 + $0x16c] sm:$0xf]
    %v275 = vld [vmem:[#allocation5 + $0x170] sm:$0xf]
    %v276 = vld [vmem:[#allocation5 + $0x174] sm:$0xf]
    %v277 = vld [vmem:[#allocation5 + $0x178] sm:$0xf]
    %v278 = vld [vmem:[#allocation5 + $0x17c] sm:$0xf]
    %v280 = vcombine.high %v182, %v182
    %v282 = vunpack.c.l.s4 1966171168
    %v283 = vunpack.c.0.s8 %v282
    %v284 = vlaneseq
    %v285 = vshrl.u32 %v284, 7
    %v286 = vsub.s32 %v283, %v285
    %v287 = vrot.slane %v182, %v286
    %v289 = vunpack.c.l.s4 1966171168
    %v290 = vunpack.c.0.s8 %v289
    %v291 = vlaneseq
    %v292 = vshrl.u32 %v291, 7
    %v293 = vsub.s32 %v290, %v292
    %v294 = vrot.slane %v280, %v293
    %v295 = vcombine.high %v287, %v287
    %v296 = vcombine.high %v294, %v294
    %v298 = vunpack.c.l.s4 1966171168
    %v299 = vunpack.c.0.s8 %v298
    %v300 = vlaneseq
    %v301 = vshrl.u32 %v300, 7
    %v302 = vsub.s32 %v299, %v301
    %v303 = vrot.slane %v287, %v302
    %v305 = vunpack.c.l.s4 1966171168
    %v306 = vunpack.c.0.s8 %v305
    %v307 = vlaneseq
    %v308 = vshrl.u32 %v307, 7
    %v309 = vsub.s32 %v306, %v308
    %v310 = vrot.slane %v294, %v309
    %v312 = vunpack.c.l.s4 1966171168
    %v313 = vunpack.c.0.s8 %v312
    %v314 = vlaneseq
    %v315 = vshrl.u32 %v314, 7
    %v316 = vsub.s32 %v313, %v315
    %v317 = vrot.slane %v295, %v316
    %v319 = vunpack.c.l.s4 1966171168
    %v320 = vunpack.c.0.s8 %v319
    %v321 = vlaneseq
    %v322 = vshrl.u32 %v321, 7
    %v323 = vsub.s32 %v320, %v322
    %v324 = vrot.slane %v296, %v323
    %v325 = vcombine.high %v303, %v303
    %v326 = vcombine.high %v317, %v317
    %v429 = vunpack.c.l.b16 %v183
    %v430 = vunpack.c.l.b16 %v184
    %v431 = vunpack.c.l.b16 %v185
    %v432 = vunpack.c.l.b16 %v186
    %v433 = vunpack.c.l.b16 %v187
    %v434 = vunpack.c.l.b16 %v188
    %v435 = vunpack.c.l.b16 %v189
    %v436 = vunpack.c.l.b16 %v190
    %v437 = vunpack.c.l.b16 %v191
    %v438 = vunpack.c.l.b16 %v192
    %v439 = vunpack.c.l.b16 %v193
    %v440 = vunpack.c.l.b16 %v194
    %v441 = vunpack.c.l.b16 %v195
    %v442 = vunpack.c.l.b16 %v196
    %v443 = vunpack.c.l.b16 %v197
    %v444 = vunpack.c.l.b16 %v198
    %v445 = vunpack.c.l.b16 %v199
    %v446 = vunpack.c.l.b16 %v200
    %v447 = vunpack.c.l.b16 %v201
    %v448 = vunpack.c.l.b16 %v202
    %v449 = vunpack.c.l.b16 %v203
    %v450 = vunpack.c.l.b16 %v204
    %v451 = vunpack.c.l.b16 %v205
    %v452 = vunpack.c.l.b16 %v206
    %v453 = vunpack.c.l.b16 %v207
    %v454 = vunpack.c.l.b16 %v208
    %v455 = vunpack.c.l.b16 %v209
    %v456 = vunpack.c.l.b16 %v210
    %v457 = vunpack.c.l.b16 %v211
    %v458 = vunpack.c.l.b16 %v212
    %v459 = vunpack.c.l.b16 %v213
    %v460 = vunpack.c.l.b16 %v214
    %v461 = vunpack.c.l.b16 %v215
    %v462 = vunpack.c.l.b16 %v216
    %v463 = vunpack.c.l.b16 %v217
    %v464 = vunpack.c.l.b16 %v218
    %v465 = vunpack.c.l.b16 %v219
    %v466 = vunpack.c.l.b16 %v220
    %v467 = vunpack.c.l.b16 %v221
    %v468 = vunpack.c.l.b16 %v222
    %v469 = vunpack.c.l.b16 %v223
    %v470 = vunpack.c.l.b16 %v224
    %v471 = vunpack.c.l.b16 %v225
    %v472 = vunpack.c.l.b16 %v226
    %v473 = vunpack.c.l.b16 %v227
    %v474 = vunpack.c.l.b16 %v228
    %v475 = vunpack.c.l.b16 %v229
    %v476 = vunpack.c.l.b16 %v230
    %v477 = vunpack.c.l.b16 %v231
    %v478 = vunpack.c.l.b16 %v232
    %v479 = vunpack.c.l.b16 %v233
    %v480 = vunpack.c.l.b16 %v234
    %v481 = vunpack.c.l.b16 %v235
    %v482 = vunpack.c.l.b16 %v236
    %v483 = vunpack.c.l.b16 %v237
    %v484 = vunpack.c.l.b16 %v238
    %v485 = vunpack.c.l.b16 %v239
    %v486 = vunpack.c.l.b16 %v240
    %v487 = vunpack.c.l.b16 %v241
    %v488 = vunpack.c.l.b16 %v242
    %v489 = vunpack.c.l.b16 %v243
    %v490 = vunpack.c.l.b16 %v244
    %v491 = vunpack.c.l.b16 %v245
    %v492 = vunpack.c.l.b16 %v246
    %v493 = vunpack.c.l.b16 %v247
    %v494 = vunpack.c.l.b16 %v248
    %v495 = vunpack.c.l.b16 %v249
    %v496 = vunpack.c.l.b16 %v250
    %v497 = vunpack.c.l.b16 %v251
    %v498 = vunpack.c.l.b16 %v252
    %v499 = vunpack.c.l.b16 %v253
    %v500 = vunpack.c.l.b16 %v254
    %v501 = vunpack.c.l.b16 %v255
    %v502 = vunpack.c.l.b16 %v256
    %v503 = vunpack.c.l.b16 %v257
    %v504 = vunpack.c.l.b16 %v258
    %v505 = vunpack.c.l.b16 %v259
    %v506 = vunpack.c.l.b16 %v260
    %v507 = vunpack.c.l.b16 %v261
    %v508 = vunpack.c.l.b16 %v262
    %v509 = vunpack.c.l.b16 %v263
    %v510 = vunpack.c.l.b16 %v264
    %v511 = vunpack.c.l.b16 %v265
    %v512 = vunpack.c.l.b16 %v266
    %v513 = vunpack.c.l.b16 %v267
    %v514 = vunpack.c.l.b16 %v268
    %v515 = vunpack.c.l.b16 %v269
    %v516 = vunpack.c.l.b16 %v270
    %v517 = vunpack.c.l.b16 %v271
    %v518 = vunpack.c.l.b16 %v272
    %v519 = vunpack.c.l.b16 %v273
    %v520 = vunpack.c.l.b16 %v274
    %v521 = vunpack.c.l.b16 %v275
    %v522 = vunpack.c.l.b16 %v276
    %v523 = vunpack.c.l.b16 %v277
    %v524 = vunpack.c.l.b16 %v278
    %v525 = vpack.c.b16 %v430, %v429
    %v526 = vpack.c.b16 %v432, %v431
    %v527 = vpack.c.b16 %v434, %v433
    %v528 = vpack.c.b16 %v436, %v435
    %v529 = vpack.c.b16 %v438, %v437
    %v530 = vpack.c.b16 %v440, %v439
    %v531 = vpack.c.b16 %v442, %v441
    %v532 = vpack.c.b16 %v444, %v443
    %v533 = vpack.c.b16 %v446, %v445
    %v534 = vpack.c.b16 %v448, %v447
    %v535 = vpack.c.b16 %v450, %v449
    %v536 = vpack.c.b16 %v452, %v451
    %v537 = vpack.c.b16 %v454, %v453
    %v538 = vpack.c.b16 %v456, %v455
    %v539 = vpack.c.b16 %v458, %v457
    %v540 = vpack.c.b16 %v460, %v459
    %v541 = vpack.c.b16 %v462, %v461
    %v542 = vpack.c.b16 %v464, %v463
    %v543 = vpack.c.b16 %v466, %v465
    %v544 = vpack.c.b16 %v468, %v467
    %v545 = vpack.c.b16 %v470, %v469
    %v546 = vpack.c.b16 %v472, %v471
    %v547 = vpack.c.b16 %v474, %v473
    %v548 = vpack.c.b16 %v476, %v475
    %v549 = vpack.c.b16 %v478, %v477
    %v550 = vpack.c.b16 %v480, %v479
    %v551 = vpack.c.b16 %v482, %v481
    %v552 = vpack.c.b16 %v484, %v483
    %v553 = vpack.c.b16 %v486, %v485
    %v554 = vpack.c.b16 %v488, %v487
    %v555 = vpack.c.b16 %v490, %v489
    %v556 = vpack.c.b16 %v492, %v491
    %v557 = vpack.c.b16 %v494, %v493
    %v558 = vpack.c.b16 %v496, %v495
    %v559 = vpack.c.b16 %v498, %v497
    %v560 = vpack.c.b16 %v500, %v499
    %v561 = vpack.c.b16 %v502, %v501
    %v562 = vpack.c.b16 %v504, %v503
    %v563 = vpack.c.b16 %v506, %v505
    %v564 = vpack.c.b16 %v508, %v507
    %v565 = vpack.c.b16 %v510, %v509
    %v566 = vpack.c.b16 %v512, %v511
    %v567 = vpack.c.b16 %v514, %v513
    %v568 = vpack.c.b16 %v516, %v515
    %v569 = vpack.c.b16 %v518, %v517
    %v570 = vpack.c.b16 %v520, %v519
    %v571 = vpack.c.b16 %v522, %v521
    %v572 = vpack.c.b16 %v524, %v523
    %621 = vmatprep.subr.bf16.mxu0 0
    %622 = vmatpush1.bf16.msra.mxu0 %v525
    %623 = vmatprep.subr.bf16.mxu0 0
    %624 = vmatpush1.bf16.msra.mxu0 %v526
    %625 = vmatprep.subr.bf16.mxu0 0
    %626 = vmatpush1.bf16.msra.mxu0 %v527
    %627 = vmatprep.subr.bf16.mxu0 0
    %628 = vmatpush1.bf16.msra.mxu0 %v528
    %629 = vmatprep.subr.bf16.mxu0 0
    %630 = vmatpush1.bf16.msra.mxu0 %v529
    %631 = vmatprep.subr.bf16.mxu0 0
    %632 = vmatpush1.bf16.msra.mxu0 %v530
    %633 = vmatprep.subr.bf16.mxu0 0
    %634 = vmatpush1.bf16.msra.mxu0 %v531
    %635 = vmatprep.subr.bf16.mxu0 0
    %636 = vmatpush1.bf16.msra.mxu0 %v532
    %637 = vmatprep.subr.bf16.mxu0 0
    %638 = vmatpush1.bf16.msra.mxu0 %v533
    %639 = vmatprep.subr.bf16.mxu0 0
    %640 = vmatpush1.bf16.msra.mxu0 %v534
    %641 = vmatprep.subr.bf16.mxu0 0
    %642 = vmatpush1.bf16.msra.mxu0 %v535
    %643 = vmatprep.subr.bf16.mxu0 0
    %644 = vmatpush1.bf16.msra.mxu0 %v536
    %645 = vmatprep.subr.bf16.mxu0 0
    %646 = vmatpush1.bf16.msra.mxu0 %v537
    %647 = vmatprep.subr.bf16.mxu0 0
    %648 = vmatpush1.bf16.msra.mxu0 %v538
    %649 = vmatprep.subr.bf16.mxu0 0
    %650 = vmatpush1.bf16.msra.mxu0 %v539
    %651 = vmatprep.subr.bf16.mxu0 0
    %652 = vmatpush1.bf16.msra.mxu0 %v540
    %653 = vmatprep.mubr.bf16.mxu0 %v317
    %654 = vmatmul.mubr.bf16.gmra.mrb[0].mxu0 %v303
    %v655 = vpop.f32.mrb[0].mxu0
    %v656 = vadd.f32 0.0, %v655
    %v657 = vpop.f32.mrb[0].mxu0
    %v658 = vpop.f32.mrb[0].mxu0
    %v659 = vpop.f32.mrb[0].mxu0
    %660 = vdwg.mxu0
    %661 = vmatprep.subr.bf16.mxu0 0
    %662 = vmatpush1.bf16.msra.mxu0 %v541
    %663 = vmatprep.subr.bf16.mxu0 0
    %664 = vmatpush1.bf16.msra.mxu0 %v542
    %665 = vmatprep.subr.bf16.mxu0 0
    %666 = vmatpush1.bf16.msra.mxu0 %v543
    %667 = vmatprep.subr.bf16.mxu0 0
    %668 = vmatpush1.bf16.msra.mxu0 %v544
    %669 = vmatprep.subr.bf16.mxu0 0
    %670 = vmatpush1.bf16.msra.mxu0 %v545
    %671 = vmatprep.subr.bf16.mxu0 0
    %672 = vmatpush1.bf16.msra.mxu0 %v546
    %673 = vmatprep.subr.bf16.mxu0 0
    %674 = vmatpush1.bf16.msra.mxu0 %v547
    %675 = vmatprep.subr.bf16.mxu0 0
    %676 = vmatpush1.bf16.msra.mxu0 %v548
    %677 = vmatprep.subr.bf16.mxu0 0
    %678 = vmatpush1.bf16.msra.mxu0 %v549
    %679 = vmatprep.subr.bf16.mxu0 0
    %680 = vmatpush1.bf16.msra.mxu0 %v550
    %681 = vmatprep.subr.bf16.mxu0 0
    %682 = vmatpush1.bf16.msra.mxu0 %v551
    %683 = vmatprep.subr.bf16.mxu0 0
    %684 = vmatpush1.bf16.msra.mxu0 %v552
    %685 = vmatprep.subr.bf16.mxu0 0
    %686 = vmatpush1.bf16.msra.mxu0 %v553
    %687 = vmatprep.subr.bf16.mxu0 0
    %688 = vmatpush1.bf16.msra.mxu0 %v554
    %689 = vmatprep.subr.bf16.mxu0 0
    %690 = vmatpush1.bf16.msra.mxu0 %v555
    %691 = vmatprep.subr.bf16.mxu0 0
    %692 = vmatpush1.bf16.msra.mxu0 %v556
    %693 = vmatprep.mubr.bf16.mxu0 %v326
    %694 = vmatmul.mubr.bf16.gmra.mrb[0].mxu0 %v325
    %v695 = vpop.f32.mrb[0].mxu0
    %v696 = vadd.f32 %v656, %v695
    %v697 = vpop.f32.mrb[0].mxu0
    %v698 = vpop.f32.mrb[0].mxu0
    %v699 = vpop.f32.mrb[0].mxu0
    %700 = vdwg.mxu0
    %701 = vmatprep.subr.bf16.mxu0 0
    %702 = vmatpush1.bf16.msra.mxu0 %v557
    %703 = vmatprep.subr.bf16.mxu0 0
    %704 = vmatpush1.bf16.msra.mxu0 %v558
    %705 = vmatprep.subr.bf16.mxu0 0
    %706 = vmatpush1.bf16.msra.mxu0 %v559
    %707 = vmatprep.subr.bf16.mxu0 0
    %708 = vmatpush1.bf16.msra.mxu0 %v560
    %709 = vmatprep.subr.bf16.mxu0 0
    %710 = vmatpush1.bf16.msra.mxu0 %v561
    %711 = vmatprep.subr.bf16.mxu0 0
    %712 = vmatpush1.bf16.msra.mxu0 %v562
    %713 = vmatprep.subr.bf16.mxu0 0
    %714 = vmatpush1.bf16.msra.mxu0 %v563
    %715 = vmatprep.subr.bf16.mxu0 0
    %716 = vmatpush1.bf16.msra.mxu0 %v564
    %717 = vmatprep.subr.bf16.mxu0 0
    %718 = vmatpush1.bf16.msra.mxu0 %v565
    %719 = vmatprep.subr.bf16.mxu0 0
    %720 = vmatpush1.bf16.msra.mxu0 %v566
    %721 = vmatprep.subr.bf16.mxu0 0
    %722 = vmatpush1.bf16.msra.mxu0 %v567
    %723 = vmatprep.subr.bf16.mxu0 0
    %724 = vmatpush1.bf16.msra.mxu0 %v568
    %725 = vmatprep.subr.bf16.mxu0 0
    %726 = vmatpush1.bf16.msra.mxu0 %v569
    %727 = vmatprep.subr.bf16.mxu0 0
    %728 = vmatpush1.bf16.msra.mxu0 %v570
    %729 = vmatprep.subr.bf16.mxu0 0
    %730 = vmatpush1.bf16.msra.mxu0 %v571
    %731 = vmatprep.subr.bf16.mxu0 0
    %732 = vmatpush1.bf16.msra.mxu0 %v572
    %733 = vmatprep.mubr.bf16.mxu0 %v324
    %734 = vmatmul.mubr.bf16.gmra.mrb[0].mxu0 %v310
    %v735 = vpop.f32.mrb[0].mxu0
    %v736 = vadd.f32 %v696, %v735
    %v737 = vpop.f32.mrb[0].mxu0
    %v738 = vpop.f32.mrb[0].mxu0
    %v739 = vpop.f32.mrb[0].mxu0
    %740 = vdwg.mxu0
    %v742 = vcombine.high %v53, %v53
    %v744 = vunpack.c.l.s4 1966171168
    %v745 = vunpack.c.0.s8 %v744
    %v746 = vlaneseq
    %v747 = vshrl.u32 %v746, 7
    %v748 = vsub.s32 %v745, %v747
    %v749 = vrot.slane %v53, %v748
    %v751 = vunpack.c.l.s4 1966171168
    %v752 = vunpack.c.0.s8 %v751
    %v753 = vlaneseq
    %v754 = vshrl.u32 %v753, 7
    %v755 = vsub.s32 %v752, %v754
    %v756 = vrot.slane %v742, %v755
    %v757 = vcombine.high %v749, %v749
    %v758 = vcombine.high %v756, %v756
    %v760 = vunpack.c.l.s4 1966171168
    %v761 = vunpack.c.0.s8 %v760
    %v762 = vlaneseq
    %v763 = vshrl.u32 %v762, 7
    %v764 = vsub.s32 %v761, %v763
    %v765 = vrot.slane %v749, %v764
    %v767 = vunpack.c.l.s4 1966171168
    %v768 = vunpack.c.0.s8 %v767
    %v769 = vlaneseq
    %v770 = vshrl.u32 %v769, 7
    %v771 = vsub.s32 %v768, %v770
    %v772 = vrot.slane %v756, %v771
    %v774 = vunpack.c.l.s4 1966171168
    %v775 = vunpack.c.0.s8 %v774
    %v776 = vlaneseq
    %v777 = vshrl.u32 %v776, 7
    %v778 = vsub.s32 %v775, %v777
    %v779 = vrot.slane %v757, %v778
    %v781 = vunpack.c.l.s4 1966171168
    %v782 = vunpack.c.0.s8 %v781
    %v783 = vlaneseq
    %v784 = vshrl.u32 %v783, 7
    %v785 = vsub.s32 %v782, %v784
    %v786 = vrot.slane %v758, %v785
    %v787 = vcombine.high %v765, %v765
    %v788 = vcombine.high %v772, %v772
    %v789 = vcombine.high %v779, %v779
    %v790 = vcombine.high %v786, %v786
    %v927 = vunpack.c.l.b16 %v54
    %v928 = vunpack.c.l.b16 %v55
    %v929 = vunpack.c.l.b16 %v56
    %v930 = vunpack.c.l.b16 %v57
    %v931 = vunpack.c.l.b16 %v58
    %v932 = vunpack.c.l.b16 %v59
    %v933 = vunpack.c.l.b16 %v60
    %v934 = vunpack.c.l.b16 %v61
    %v935 = vunpack.c.l.b16 %v62
    %v936 = vunpack.c.l.b16 %v63
    %v937 = vunpack.c.l.b16 %v64
    %v938 = vunpack.c.l.b16 %v65
    %v939 = vunpack.c.l.b16 %v66
    %v940 = vunpack.c.l.b16 %v67
    %v941 = vunpack.c.l.b16 %v68
    %v942 = vunpack.c.l.b16 %v69
    %v943 = vunpack.c.l.b16 %v70
    %v944 = vunpack.c.l.b16 %v71
    %v945 = vunpack.c.l.b16 %v72
    %v946 = vunpack.c.l.b16 %v73
    %v947 = vunpack.c.l.b16 %v74
    %v948 = vunpack.c.l.b16 %v75
    %v949 = vunpack.c.l.b16 %v76
    %v950 = vunpack.c.l.b16 %v77
    %v951 = vunpack.c.l.b16 %v78
    %v952 = vunpack.c.l.b16 %v79
    %v953 = vunpack.c.l.b16 %v80
    %v954 = vunpack.c.l.b16 %v81
    %v955 = vunpack.c.l.b16 %v82
    %v956 = vunpack.c.l.b16 %v83
    %v957 = vunpack.c.l.b16 %v84
    %v958 = vunpack.c.l.b16 %v85
    %v959 = vunpack.c.l.b16 %v86
    %v960 = vunpack.c.l.b16 %v87
    %v961 = vunpack.c.l.b16 %v88
    %v962 = vunpack.c.l.b16 %v89
    %v963 = vunpack.c.l.b16 %v90
    %v964 = vunpack.c.l.b16 %v91
    %v965 = vunpack.c.l.b16 %v92
    %v966 = vunpack.c.l.b16 %v93
    %v967 = vunpack.c.l.b16 %v94
    %v968 = vunpack.c.l.b16 %v95
    %v969 = vunpack.c.l.b16 %v96
    %v970 = vunpack.c.l.b16 %v97
    %v971 = vunpack.c.l.b16 %v98
    %v972 = vunpack.c.l.b16 %v99
    %v973 = vunpack.c.l.b16 %v100
    %v974 = vunpack.c.l.b16 %v101
    %v975 = vunpack.c.l.b16 %v102
    %v976 = vunpack.c.l.b16 %v103
    %v977 = vunpack.c.l.b16 %v104
    %v978 = vunpack.c.l.b16 %v105
    %v979 = vunpack.c.l.b16 %v106
    %v980 = vunpack.c.l.b16 %v107
    %v981 = vunpack.c.l.b16 %v108
    %v982 = vunpack.c.l.b16 %v109
    %v983 = vunpack.c.l.b16 %v110
    %v984 = vunpack.c.l.b16 %v111
    %v985 = vunpack.c.l.b16 %v112
    %v986 = vunpack.c.l.b16 %v113
    %v987 = vunpack.c.l.b16 %v114
    %v988 = vunpack.c.l.b16 %v115
    %v989 = vunpack.c.l.b16 %v116
    %v990 = vunpack.c.l.b16 %v117
    %v991 = vunpack.c.l.b16 %v118
    %v992 = vunpack.c.l.b16 %v119
    %v993 = vunpack.c.l.b16 %v120
    %v994 = vunpack.c.l.b16 %v121
    %v995 = vunpack.c.l.b16 %v122
    %v996 = vunpack.c.l.b16 %v123
    %v997 = vunpack.c.l.b16 %v124
    %v998 = vunpack.c.l.b16 %v125
    %v999 = vunpack.c.l.b16 %v126
    %v1000 = vunpack.c.l.b16 %v127
    %v1001 = vunpack.c.l.b16 %v128
    %v1002 = vunpack.c.l.b16 %v129
    %v1003 = vunpack.c.l.b16 %v130
    %v1004 = vunpack.c.l.b16 %v131
    %v1005 = vunpack.c.l.b16 %v132
    %v1006 = vunpack.c.l.b16 %v133
    %v1007 = vunpack.c.l.b16 %v134
    %v1008 = vunpack.c.l.b16 %v135
    %v1009 = vunpack.c.l.b16 %v136
    %v1010 = vunpack.c.l.b16 %v137
    %v1011 = vunpack.c.l.b16 %v138
    %v1012 = vunpack.c.l.b16 %v139
    %v1013 = vunpack.c.l.b16 %v140
    %v1014 = vunpack.c.l.b16 %v141
    %v1015 = vunpack.c.l.b16 %v142
    %v1016 = vunpack.c.l.b16 %v143
    %v1017 = vunpack.c.l.b16 %v144
    %v1018 = vunpack.c.l.b16 %v145
    %v1019 = vunpack.c.l.b16 %v146
    %v1020 = vunpack.c.l.b16 %v147
    %v1021 = vunpack.c.l.b16 %v148
    %v1022 = vunpack.c.l.b16 %v149
    %v1023 = vunpack.c.l.b16 %v150
    %v1024 = vunpack.c.l.b16 %v151
    %v1025 = vunpack.c.l.b16 %v152
    %v1026 = vunpack.c.l.b16 %v153
    %v1027 = vunpack.c.l.b16 %v154
    %v1028 = vunpack.c.l.b16 %v155
    %v1029 = vunpack.c.l.b16 %v156
    %v1030 = vunpack.c.l.b16 %v157
    %v1031 = vunpack.c.l.b16 %v158
    %v1032 = vunpack.c.l.b16 %v159
    %v1033 = vunpack.c.l.b16 %v160
    %v1034 = vunpack.c.l.b16 %v161
    %v1035 = vunpack.c.l.b16 %v162
    %v1036 = vunpack.c.l.b16 %v163
    %v1037 = vunpack.c.l.b16 %v164
    %v1038 = vunpack.c.l.b16 %v165
    %v1039 = vunpack.c.l.b16 %v166
    %v1040 = vunpack.c.l.b16 %v167
    %v1041 = vunpack.c.l.b16 %v168
    %v1042 = vunpack.c.l.b16 %v169
    %v1043 = vunpack.c.l.b16 %v170
    %v1044 = vunpack.c.l.b16 %v171
    %v1045 = vunpack.c.l.b16 %v172
    %v1046 = vunpack.c.l.b16 %v173
    %v1047 = vunpack.c.l.b16 %v174
    %v1048 = vunpack.c.l.b16 %v175
    %v1049 = vunpack.c.l.b16 %v176
    %v1050 = vunpack.c.l.b16 %v177
    %v1051 = vunpack.c.l.b16 %v178
    %v1052 = vunpack.c.l.b16 %v179
    %v1053 = vunpack.c.l.b16 %v180
    %v1054 = vunpack.c.l.b16 %v181
    %v1055 = vpack.c.b16 %v928, %v927
    %v1056 = vpack.c.b16 %v930, %v929
    %v1057 = vpack.c.b16 %v932, %v931
    %v1058 = vpack.c.b16 %v934, %v933
    %v1059 = vpack.c.b16 %v936, %v935
    %v1060 = vpack.c.b16 %v938, %v937
    %v1061 = vpack.c.b16 %v940, %v939
    %v1062 = vpack.c.b16 %v942, %v941
    %v1063 = vpack.c.b16 %v944, %v943
    %v1064 = vpack.c.b16 %v946, %v945
    %v1065 = vpack.c.b16 %v948, %v947
    %v1066 = vpack.c.b16 %v950, %v949
    %v1067 = vpack.c.b16 %v952, %v951
    %v1068 = vpack.c.b16 %v954, %v953
    %v1069 = vpack.c.b16 %v956, %v955
    %v1070 = vpack.c.b16 %v958, %v957
    %v1071 = vpack.c.b16 %v960, %v959
    %v1072 = vpack.c.b16 %v962, %v961
    %v1073 = vpack.c.b16 %v964, %v963
    %v1074 = vpack.c.b16 %v966, %v965
    %v1075 = vpack.c.b16 %v968, %v967
    %v1076 = vpack.c.b16 %v970, %v969
    %v1077 = vpack.c.b16 %v972, %v971
    %v1078 = vpack.c.b16 %v974, %v973
    %v1079 = vpack.c.b16 %v976, %v975
    %v1080 = vpack.c.b16 %v978, %v977
    %v1081 = vpack.c.b16 %v980, %v979
    %v1082 = vpack.c.b16 %v982, %v981
    %v1083 = vpack.c.b16 %v984, %v983
    %v1084 = vpack.c.b16 %v986, %v985
    %v1085 = vpack.c.b16 %v988, %v987
    %v1086 = vpack.c.b16 %v990, %v989
    %v1087 = vpack.c.b16 %v992, %v991
    %v1088 = vpack.c.b16 %v994, %v993
    %v1089 = vpack.c.b16 %v996, %v995
    %v1090 = vpack.c.b16 %v998, %v997
    %v1091 = vpack.c.b16 %v1000, %v999
    %v1092 = vpack.c.b16 %v1002, %v1001
    %v1093 = vpack.c.b16 %v1004, %v1003
    %v1094 = vpack.c.b16 %v1006, %v1005
    %v1095 = vpack.c.b16 %v1008, %v1007
    %v1096 = vpack.c.b16 %v1010, %v1009
    %v1097 = vpack.c.b16 %v1012, %v1011
    %v1098 = vpack.c.b16 %v1014, %v1013
    %v1099 = vpack.c.b16 %v1016, %v1015
    %v1100 = vpack.c.b16 %v1018, %v1017
    %v1101 = vpack.c.b16 %v1020, %v1019
    %v1102 = vpack.c.b16 %v1022, %v1021
    %v1103 = vpack.c.b16 %v1024, %v1023
    %v1104 = vpack.c.b16 %v1026, %v1025
    %v1105 = vpack.c.b16 %v1028, %v1027
    %v1106 = vpack.c.b16 %v1030, %v1029
    %v1107 = vpack.c.b16 %v1032, %v1031
    %v1108 = vpack.c.b16 %v1034, %v1033
    %v1109 = vpack.c.b16 %v1036, %v1035
    %v1110 = vpack.c.b16 %v1038, %v1037
    %v1111 = vpack.c.b16 %v1040, %v1039
    %v1112 = vpack.c.b16 %v1042, %v1041
    %v1113 = vpack.c.b16 %v1044, %v1043
    %v1114 = vpack.c.b16 %v1046, %v1045
    %v1115 = vpack.c.b16 %v1048, %v1047
    %v1116 = vpack.c.b16 %v1050, %v1049
    %v1117 = vpack.c.b16 %v1052, %v1051
    %v1118 = vpack.c.b16 %v1054, %v1053
    %1183 = vmatprep.subr.bf16.mxu0 0
    %1184 = vmatpush1.bf16.msra.mxu0 %v1055
    %1185 = vmatprep.subr.bf16.mxu0 0
    %1186 = vmatpush1.bf16.msra.mxu0 %v1056
    %1187 = vmatprep.subr.bf16.mxu0 0
    %1188 = vmatpush1.bf16.msra.mxu0 %v1057
    %1189 = vmatprep.subr.bf16.mxu0 0
    %1190 = vmatpush1.bf16.msra.mxu0 %v1058
    %1191 = vmatprep.subr.bf16.mxu0 0
    %1192 = vmatpush1.bf16.msra.mxu0 %v1059
    %1193 = vmatprep.subr.bf16.mxu0 0
    %1194 = vmatpush1.bf16.msra.mxu0 %v1060
    %1195 = vmatprep.subr.bf16.mxu0 0
    %1196 = vmatpush1.bf16.msra.mxu0 %v1061
    %1197 = vmatprep.subr.bf16.mxu0 0
    %1198 = vmatpush1.bf16.msra.mxu0 %v1062
    %1199 = vmatprep.subr.bf16.mxu0 0
    %1200 = vmatpush1.bf16.msra.mxu0 %v1063
    %1201 = vmatprep.subr.bf16.mxu0 0
    %1202 = vmatpush1.bf16.msra.mxu0 %v1064
    %1203 = vmatprep.subr.bf16.mxu0 0
    %1204 = vmatpush1.bf16.msra.mxu0 %v1065
    %1205 = vmatprep.subr.bf16.mxu0 0
    %1206 = vmatpush1.bf16.msra.mxu0 %v1066
    %1207 = vmatprep.subr.bf16.mxu0 0
    %1208 = vmatpush1.bf16.msra.mxu0 %v1067
    %1209 = vmatprep.subr.bf16.mxu0 0
    %1210 = vmatpush1.bf16.msra.mxu0 %v1068
    %1211 = vmatprep.subr.bf16.mxu0 0
    %1212 = vmatpush1.bf16.msra.mxu0 %v1069
    %1213 = vmatprep.subr.bf16.mxu0 0
    %1214 = vmatpush1.bf16.msra.mxu0 %v1070
    %1215 = vmatprep.mubr.bf16.mxu0 %v779
    %1216 = vmatmul.mubr.bf16.gmra.mrb[0].mxu0 %v765
    %v1217 = vpop.f32.mrb[0].mxu0
    %v1218 = vadd.f32 %v736, %v1217
    %v1219 = vpop.f32.mrb[0].mxu0
    %v1220 = vpop.f32.mrb[0].mxu0
    %v1221 = vpop.f32.mrb[0].mxu0
    %1222 = vdwg.mxu0
    %1223 = vmatprep.subr.bf16.mxu0 0
    %1224 = vmatpush1.bf16.msra.mxu0 %v1071
    %1225 = vmatprep.subr.bf16.mxu0 0
    %1226 = vmatpush1.bf16.msra.mxu0 %v1072
    %1227 = vmatprep.subr.bf16.mxu0 0
    %1228 = vmatpush1.bf16.msra.mxu0 %v1073
    %1229 = vmatprep.subr.bf16.mxu0 0
    %1230 = vmatpush1.bf16.msra.mxu0 %v1074
    %1231 = vmatprep.subr.bf16.mxu0 0
    %1232 = vmatpush1.bf16.msra.mxu0 %v1075
    %1233 = vmatprep.subr.bf16.mxu0 0
    %1234 = vmatpush1.bf16.msra.mxu0 %v1076
    %1235 = vmatprep.subr.bf16.mxu0 0
    %1236 = vmatpush1.bf16.msra.mxu0 %v1077
    %1237 = vmatprep.subr.bf16.mxu0 0
    %1238 = vmatpush1.bf16.msra.mxu0 %v1078
    %1239 = vmatprep.subr.bf16.mxu0 0
    %1240 = vmatpush1.bf16.msra.mxu0 %v1079
    %1241 = vmatprep.subr.bf16.mxu0 0
    %1242 = vmatpush1.bf16.msra.mxu0 %v1080
    %1243 = vmatprep.subr.bf16.mxu0 0
    %1244 = vmatpush1.bf16.msra.mxu0 %v1081
    %1245 = vmatprep.subr.bf16.mxu0 0
    %1246 = vmatpush1.bf16.msra.mxu0 %v1082
    %1247 = vmatprep.subr.bf16.mxu0 0
    %1248 = vmatpush1.bf16.msra.mxu0 %v1083
    %1249 = vmatprep.subr.bf16.mxu0 0
    %1250 = vmatpush1.bf16.msra.mxu0 %v1084
    %1251 = vmatprep.subr.bf16.mxu0 0
    %1252 = vmatpush1.bf16.msra.mxu0 %v1085
    %1253 = vmatprep.subr.bf16.mxu0 0
    %1254 = vmatpush1.bf16.msra.mxu0 %v1086
    %1255 = vmatprep.mubr.bf16.mxu0 %v789
    %1256 = vmatmul.mubr.bf16.gmra.mrb[0].mxu0 %v787
    %v1257 = vpop.f32.mrb[0].mxu0
    %v1258 = vadd.f32 %v1218, %v1257
    %v1259 = vpop.f32.mrb[0].mxu0
    %v1260 = vpop.f32.mrb[0].mxu0
    %v1261 = vpop.f32.mrb[0].mxu0
    %1262 = vdwg.mxu0
    %1263 = vmatprep.subr.bf16.mxu0 0
    %1264 = vmatpush1.bf16.msra.mxu0 %v1087
    %1265 = vmatprep.subr.bf16.mxu0 0
    %1266 = vmatpush1.bf16.msra.mxu0 %v1088
    %1267 = vmatprep.subr.bf16.mxu0 0
    %1268 = vmatpush1.bf16.msra.mxu0 %v1089
    %1269 = vmatprep.subr.bf16.mxu0 0
    %1270 = vmatpush1.bf16.msra.mxu0 %v1090
    %1271 = vmatprep.subr.bf16.mxu0 0
    %1272 = vmatpush1.bf16.msra.mxu0 %v1091
    %1273 = vmatprep.subr.bf16.mxu0 0
    %1274 = vmatpush1.bf16.msra.mxu0 %v1092
    %1275 = vmatprep.subr.bf16.mxu0 0
    %1276 = vmatpush1.bf16.msra.mxu0 %v1093
    %1277 = vmatprep.subr.bf16.mxu0 0
    %1278 = vmatpush1.bf16.msra.mxu0 %v1094
    %1279 = vmatprep.subr.bf16.mxu0 0
    %1280 = vmatpush1.bf16.msra.mxu0 %v1095
    %1281 = vmatprep.subr.bf16.mxu0 0
    %1282 = vmatpush1.bf16.msra.mxu0 %v1096
    %1283 = vmatprep.subr.bf16.mxu0 0
    %1284 = vmatpush1.bf16.msra.mxu0 %v1097
    %1285 = vmatprep.subr.bf16.mxu0 0
    %1286 = vmatpush1.bf16.msra.mxu0 %v1098
    %1287 = vmatprep.subr.bf16.mxu0 0
    %1288 = vmatpush1.bf16.msra.mxu0 %v1099
    %1289 = vmatprep.subr.bf16.mxu0 0
    %1290 = vmatpush1.bf16.msra.mxu0 %v1100
    %1291 = vmatprep.subr.bf16.mxu0 0
    %1292 = vmatpush1.bf16.msra.mxu0 %v1101
    %1293 = vmatprep.subr.bf16.mxu0 0
    %1294 = vmatpush1.bf16.msra.mxu0 %v1102
    %1295 = vmatprep.mubr.bf16.mxu0 %v786
    %1296 = vmatmul.mubr.bf16.gmra.mrb[0].mxu0 %v772
    %v1297 = vpop.f32.mrb[0].mxu0
    %v1298 = vadd.f32 %v1258, %v1297
    %v1299 = vpop.f32.mrb[0].mxu0
    %v1300 = vpop.f32.mrb[0].mxu0
    %v1301 = vpop.f32.mrb[0].mxu0
    %1302 = vdwg.mxu0
    %1303 = vmatprep.subr.bf16.mxu0 0
    %1304 = vmatpush1.bf16.msra.mxu0 %v1103
    %1305 = vmatprep.subr.bf16.mxu0 0
    %1306 = vmatpush1.bf16.msra.mxu0 %v1104
    %1307 = vmatprep.subr.bf16.mxu0 0
    %1308 = vmatpush1.bf16.msra.mxu0 %v1105
    %1309 = vmatprep.subr.bf16.mxu0 0
    %1310 = vmatpush1.bf16.msra.mxu0 %v1106
    %1311 = vmatprep.subr.bf16.mxu0 0
    %1312 = vmatpush1.bf16.msra.mxu0 %v1107
    %1313 = vmatprep.subr.bf16.mxu0 0
    %1314 = vmatpush1.bf16.msra.mxu0 %v1108
    %1315 = vmatprep.subr.bf16.mxu0 0
    %1316 = vmatpush1.bf16.msra.mxu0 %v1109
    %1317 = vmatprep.subr.bf16.mxu0 0
    %1318 = vmatpush1.bf16.msra.mxu0 %v1110
    %1319 = vmatprep.subr.bf16.mxu0 0
    %1320 = vmatpush1.bf16.msra.mxu0 %v1111
    %1321 = vmatprep.subr.bf16.mxu0 0
    %1322 = vmatpush1.bf16.msra.mxu0 %v1112
    %1323 = vmatprep.subr.bf16.mxu0 0
    %1324 = vmatpush1.bf16.msra.mxu0 %v1113
    %1325 = vmatprep.subr.bf16.mxu0 0
    %1326 = vmatpush1.bf16.msra.mxu0 %v1114
    %1327 = vmatprep.subr.bf16.mxu0 0
    %1328 = vmatpush1.bf16.msra.mxu0 %v1115
    %1329 = vmatprep.subr.bf16.mxu0 0
    %1330 = vmatpush1.bf16.msra.mxu0 %v1116
    %1331 = vmatprep.subr.bf16.mxu0 0
    %1332 = vmatpush1.bf16.msra.mxu0 %v1117
    %1333 = vmatprep.subr.bf16.mxu0 0
    %1334 = vmatpush1.bf16.msra.mxu0 %v1118
    %1335 = vmatprep.mubr.bf16.mxu0 %v790
    %1336 = vmatmul.mubr.bf16.gmra.mrb[0].mxu0 %v788
    %v1337 = vpop.f32.mrb[0].mxu0
    %v1338 = vadd.f32 %v1298, %v1337
    %v1339 = vpop.f32.mrb[0].mxu0
    %v1340 = vpop.f32.mrb[0].mxu0
    %v1341 = vpop.f32.mrb[0].mxu0
    %1342 = vdwg.mxu0
    %v1343 = vld [vmem:[%s4] sm:$0x1]
    %v1345 = vlaneseq
    %v1346 = vshrl.u32 %v1345, 7
    %v1347 = vsub.s32 0, %v1346
    %v1348 = vrot.slane %v1343, %v1347
    %v1350 = vadd.f32 %v1338, %v1348
    %v1351 = vmax.f32 %v1350, 0.0
    %v1352 = vpack.c.bf16 %v1351, %v1351
    %v1353 = vld [vmem:[%s5] sm:$0xf]
    %v1354 = vld [vmem:[%s5 + $0x4] sm:$0xf]
    %v1355 = vld [vmem:[%s5 + $0x8] sm:$0xf]
    %v1356 = vld [vmem:[%s5 + $0xc] sm:$0xf]
    %v1357 = vld [vmem:[%s5 + $0x10] sm:$0xf]
    %v1358 = vld [vmem:[%s5 + $0x14] sm:$0xf]
    %v1359 = vld [vmem:[%s5 + $0x18] sm:$0xf]
    %v1360 = vld [vmem:[%s5 + $0x1c] sm:$0xf]
    %v1361 = vld [vmem:[%s5 + $0x20] sm:$0xf]
    %v1362 = vld [vmem:[%s5 + $0x24] sm:$0xf]
    %v1363 = vld [vmem:[%s5 + $0x28] sm:$0xf]
    %v1364 = vld [vmem:[%s5 + $0x2c] sm:$0xf]
    %v1365 = vld [vmem:[%s5 + $0x30] sm:$0xf]
    %v1366 = vld [vmem:[%s5 + $0x34] sm:$0xf]
    %v1367 = vld [vmem:[%s5 + $0x38] sm:$0xf]
    %v1368 = vld [vmem:[%s5 + $0x3c] sm:$0xf]
    %v1385 = vunpack.c.l.b16 %v1353
    %v1386 = vunpack.c.l.b16 %v1354
    %v1387 = vunpack.c.l.b16 %v1355
    %v1388 = vunpack.c.l.b16 %v1356
    %v1389 = vunpack.c.l.b16 %v1357
    %v1390 = vunpack.c.l.b16 %v1358
    %v1391 = vunpack.c.l.b16 %v1359
    %v1392 = vunpack.c.l.b16 %v1360
    %v1393 = vunpack.c.l.b16 %v1361
    %v1394 = vunpack.c.l.b16 %v1362
    %v1395 = vunpack.c.l.b16 %v1363
    %v1396 = vunpack.c.l.b16 %v1364
    %v1397 = vunpack.c.l.b16 %v1365
    %v1398 = vunpack.c.l.b16 %v1366
    %v1399 = vunpack.c.l.b16 %v1367
    %v1400 = vunpack.c.l.b16 %v1368
    %v1401 = vpack.c.b16 %v1386, %v1385
    %v1402 = vpack.c.b16 %v1388, %v1387
    %v1403 = vpack.c.b16 %v1390, %v1389
    %v1404 = vpack.c.b16 %v1392, %v1391
    %v1405 = vpack.c.b16 %v1394, %v1393
    %v1406 = vpack.c.b16 %v1396, %v1395
    %v1407 = vpack.c.b16 %v1398, %v1397
    %v1408 = vpack.c.b16 %v1400, %v1399
    %1417 = vmatprep.subr.bf16.mxu0 0
    %1418 = vmatpush1.bf16.msra.mxu0 %v1401
    %1419 = vmatprep.subr.bf16.mxu0 0
    %1420 = vmatpush1.bf16.msra.mxu0 %v1402
    %1421 = vmatprep.subr.bf16.mxu0 0
    %1422 = vmatpush1.bf16.msra.mxu0 %v1403
    %1423 = vmatprep.subr.bf16.mxu0 0
    %1424 = vmatpush1.bf16.msra.mxu0 %v1404
    %1425 = vmatprep.subr.bf16.mxu0 0
    %1426 = vmatpush1.bf16.msra.mxu0 %v1405
    %1427 = vmatprep.subr.bf16.mxu0 0
    %1428 = vmatpush1.bf16.msra.mxu0 %v1406
    %1429 = vmatprep.subr.bf16.mxu0 0
    %1430 = vmatpush1.bf16.msra.mxu0 %v1407
    %1431 = vmatprep.subr.bf16.mxu0 0
    %1432 = vmatpush1.bf16.msra.mxu0 %v1408
    %1433 = vmatprep.subr.bf16.mxu0 0
    %1434 = vmatpush1.bf16.msra.mxu0 0
    %1435 = vmatprep.subr.bf16.mxu0 0
    %1436 = vmatpush1.bf16.msra.mxu0 0
    %1437 = vmatprep.subr.bf16.mxu0 0
    %1438 = vmatpush1.bf16.msra.mxu0 0
    %1439 = vmatprep.subr.bf16.mxu0 0
    %1440 = vmatpush1.bf16.msra.mxu0 0
    %1441 = vmatprep.subr.bf16.mxu0 0
    %1442 = vmatpush1.bf16.msra.mxu0 0
    %1443 = vmatprep.subr.bf16.mxu0 0
    %1444 = vmatpush1.bf16.msra.mxu0 0
    %1445 = vmatprep.subr.bf16.mxu0 0
    %1446 = vmatpush1.bf16.msra.mxu0 0
    %1447 = vmatprep.subr.bf16.mxu0 0
    %1448 = vmatpush1.bf16.msra.mxu0 0
    %1449 = vmatprep.mubr.bf16.mxu0 0
    %1450 = vmatmul.mubr.bf16.gmra.mrb[0].mxu0 %v1352
    %v1451 = vpop.f32.mrb[0].mxu0
    %v1452 = vadd.f32 0.0, %v1451
    %v1453 = vpop.f32.mrb[0].mxu0
    %v1454 = vpop.f32.mrb[0].mxu0
    %v1455 = vpop.f32.mrb[0].mxu0
    %1456 = vdwg.mxu0
    %vm1457 = vcmask 25600
    %1458 = vst.msk [vmem:[#allocation7] sm:$0x3] %vm1457, %v1452
    // Predicated region
    $region34: #{tpu_custom_call.1} parent=1 // pred_check
      _
    $region35: #{tpu_custom_call.1} parent=1 // pred_check_branch
      %1460 = sbr.rel (0) target = $region37
    $region36: #{tpu_custom_call.1} parent=1 // pred_region
      %s1462 = ssub.s32 32, 32
      %1463 = vsyncadd [#allocation4], %s1462
      %s1465 = sshll.u32 [#allocation7], 4
      %s1466 = int_to_ptr.vmem [resolvable:$true] %s1465
      %1468 = dma.vmem_to_hbm [thread:$0]  %s1466, 32, %s6, [#allocation4]
    $region37: #{tpu_custom_call.1} parent=1 // pred_fallthru
      _
    // Predicated region
    $region38: #{tpu_custom_call.1} parent=1 // pred_check
      _
    $region39: #{tpu_custom_call.1} parent=1 // pred_check_branch
      %1470 = sbr.rel (0) target = $region41
    $region40: #{tpu_custom_call.1} parent=1 // pred_region
      %1471 = dma.done [#allocation4], 32
    $region41: #{tpu_custom_call.1} parent=1 // pred_fallthru
      _
    %1472 = vsyncpa [#allocation3], 1
    %1473 = vsyncpa [#allocation6], 1
    %1474 = vsyncpa [#allocation4], 1

</llo_original>
